<compile_context>
chip_gen: v7x
topology: tpu7x:2x2x1
jax: 0.10.0
libtpu: 0.0.40
codegen_flags: <defaults>
</compile_context>

<pallas_src>
import jax
import jax.numpy as jnp
from jax.experimental import pallas as pl
from jax.experimental.pallas import tpu as pltpu

LANES = 128
SUBLANES = 8
TB_MAX = 2048      # max rows per batch tile (double-buffered f32 x tile ~512 KiB)
SPLIT_MIN = 256    # below this many rows, one grid step minimizes per-step overhead


def policy_net_kernel(x_ref, w1_ref, b1_ref, w2_ref, b2_ref, out_ref):
    # x arrives as f32; cast to bf16 here (no separate wrapper-side cast pass).
    x = x_ref[...].astype(jnp.bfloat16)       # (TB, in)
    b1 = b1_ref[...]                           # (1, 128)      f32
    b2 = b2_ref[...]                           # (1, OUT_PAD)  f32, -inf in padded lanes

    # fc1 + ReLU: bf16 operands -> f32 accumulate on the MXU.
    h = jnp.dot(x, w1_ref[...], preferred_element_type=jnp.float32) + b1
    h = jnp.maximum(h, 0.0)

    # fc2: bf16 into the MXU again, accumulate in f32. Padded output lanes get
    # -inf logits via b2, so they vanish under the softmax below.
    logits = jnp.dot(h.astype(jnp.bfloat16), w2_ref[...],
                     preferred_element_type=jnp.float32) + b2

    # Numerically stable softmax in f32 over all 128 lanes (exact divide so
    # rows sum to 1 for downstream sampling / log-probs).
    m = jnp.max(logits, axis=-1, keepdims=True)
    e = jnp.exp(logits - m)
    denom = jnp.sum(e, axis=-1, keepdims=True)
    probs = e / denom

    # Narrow store: only the real output lanes are written back.
    out_ref[...] = probs[:, :out_ref.shape[1]]


def _round_up(n, m):
    return ((n + m - 1) // m) * m


def _choose_batch_tiling(batch):
    """Returns (tile_rows, num_tiles). Padded batch = tile_rows * num_tiles."""
    b_pad = _round_up(batch, SUBLANES)
    if b_pad < SPLIT_MIN:
        return b_pad, 1                      # latency path: single grid step
    # Even number of grid steps so v7x's 2 TensorCores get balanced work.
    nb = 2 * ((b_pad + 2 * TB_MAX - 1) // (2 * TB_MAX))
    tb = _round_up((b_pad + nb - 1) // nb, SUBLANES)
    return tb, nb


def prepare_params(w1, b1, w2, b2):
    """One-time parameter prep (hoisted out of the per-call forward path).

    Weights stored transposed vs. PyTorch: w1 (in, 128), w2 (128, out).
    Output features are padded to 128 lanes; padded bias lanes get -inf so they
    contribute exp(-inf) == 0 to the in-kernel softmax.
    """
    in_size, hidden = w1.shape
    out_size = w2.shape[1]
    out_pad = _round_up(out_size, LANES)

    w1b = w1.astype(jnp.bfloat16)
    b1f = b1.astype(jnp.float32).reshape(1, hidden)
    w2p = (jnp.zeros((hidden, out_pad), jnp.bfloat16)
           .at[:, :out_size].set(w2.astype(jnp.bfloat16)))
    b2p = (jnp.full((1, out_pad), -jnp.inf, jnp.float32)
           .at[:, :out_size].set(b2.astype(jnp.float32).reshape(1, out_size)))
    return (w1b, b1f, w2p, b2p, out_size)


def policy_network_forward(x, params):
    """x: (B, input_size) f32; params from prepare_params.
    Returns softmax probabilities (B, output_size) in f32."""
    w1b, b1f, w2p, b2p, out_size = params
    B, in_size = x.shape
    hidden = w1b.shape[1]
    out_pad = w2p.shape[1]

    tb, nb = _choose_batch_tiling(B)
    b_pad = tb * nb

    # Only pad the batch when needed (B not a multiple of the tile grid).
    if b_pad != B:
        xp = jnp.zeros((b_pad, in_size), x.dtype).at[:B].set(x)
    else:
        xp = x

    out = pl.pallas_call(
        policy_net_kernel,
        out_shape=jax.ShapeDtypeStruct((b_pad, out_size), jnp.float32),
        grid=(nb,),
        in_specs=[
            pl.BlockSpec((tb, in_size), lambda i: (i, 0)),        # x tile (f32)
            pl.BlockSpec((in_size, hidden), lambda i: (0, 0)),    # w1 (resident)
            pl.BlockSpec((1, hidden), lambda i: (0, 0)),          # b1 (resident)
            pl.BlockSpec((hidden, out_pad), lambda i: (0, 0)),    # w2 (resident)
            pl.BlockSpec((1, out_pad), lambda i: (0, 0)),         # b2 (resident)
        ],
        out_specs=pl.BlockSpec((tb, out_size), lambda i: (i, 0)), # narrow store
        compiler_params=pltpu.CompilerParams(
            dimension_semantics=("parallel",),
        ),
    )(xp, w1b, b1f, w2p, b2p)

    return out if b_pad == B else out[:B]


def init_params(key, input_size, hidden_size, output_size):
    """Deterministic init mimicking nn.Linear's uniform(-1/sqrt(fan_in), 1/sqrt(fan_in))."""
    k1, k2, k3, k4 = jax.random.split(key, 4)
    bound1 = 1.0 / jnp.sqrt(jnp.float32(input_size))
    bound2 = 1.0 / jnp.sqrt(jnp.float32(hidden_size))
    w1 = jax.random.uniform(k1, (input_size, hidden_size), jnp.float32, -bound1, bound1)
    b1 = jax.random.uniform(k2, (1, hidden_size), jnp.float32, -bound1, bound1)
    w2 = jax.random.uniform(k3, (hidden_size, output_size), jnp.float32, -bound2, bound2)
    b2 = jax.random.uniform(k4, (1, output_size), jnp.float32, -bound2, bound2)
    return w1, b1, w2, b2


def reference_forward(x, w1, b1, w2, b2):
    h = jnp.maximum(x @ w1 + b1, 0.0)
    logits = h @ w2 + b2
    return jax.nn.softmax(logits, axis=-1)


if __name__ == "__main__":
    INPUT_SIZE = 32
    HIDDEN = 128           # fixed by the module (fc1 -> 128)
    OUTPUT_SIZE = 8

    key = jax.random.PRNGKey(0)
    kx_small, kx_big, kp = jax.random.split(key, 3)
    w1, b1, w2, b2 = init_params(kp, INPUT_SIZE, HIDDEN, OUTPUT_SIZE)

    # One-time parameter prep (not on the per-call path).
    params = prepare_params(w1, b1, w2, b2)

    # Small latency-style call (B=2 -> single 8-row tile, one grid step).
    x_small = jax.random.normal(kx_small, (2, INPUT_SIZE), jnp.float32)
    out_small = jax.block_until_ready(policy_network_forward(x_small, params))

    # Batched call exercising the batch grid (B=512 -> two 256-row tiles).
    x_big = jax.random.normal(kx_big, (512, INPUT_SIZE), jnp.float32)
    out_big = jax.block_until_ready(policy_network_forward(x_big, params))

    # Correctness vs. f32 reference (bf16 MXU operands -> small tolerance).
    ref_small = reference_forward(x_small, w1, b1, w2, b2)
    ref_big = reference_forward(x_big, w1, b1, w2, b2)
    assert out_small.shape == (2, OUTPUT_SIZE)
    assert out_big.shape == (512, OUTPUT_SIZE)
    assert jnp.allclose(out_small, ref_small, atol=2.5e-2, rtol=2.5e-2)
    assert jnp.allclose(out_big, ref_big, atol=2.5e-2, rtol=2.5e-2)
    # rows of a softmax must sum to ~1 (exact divide -> tight tolerance)
    assert jnp.allclose(jnp.sum(out_small, axis=-1), jnp.ones((2,)), atol=1e-5)
    assert jnp.allclose(jnp.sum(out_big, axis=-1), jnp.ones((512,)), atol=1e-5)

    print("KERNEL_OK")
</pallas_src>

<mosaic_0001>
module attributes {stable_mosaic.version = 11 : i64} {
  func.func @policy_net_kernel(%arg0: i32, %arg1: memref<8x32xf32, #tpu.memory_space<vmem>>, %arg2: memref<32x128xbf16, #tpu.memory_space<vmem>>, %arg3: memref<1x128xf32, #tpu.memory_space<vmem>>, %arg4: memref<128x128xbf16, #tpu.memory_space<vmem>>, %arg5: memref<1x128xf32, #tpu.memory_space<vmem>>, %arg6: memref<8x8xf32, #tpu.memory_space<vmem>>) attributes {dimension_semantics = [#tpu.dimension_semantics<parallel>], iteration_bounds = array<i64: 1>, scalar_prefetch = 0 : i64, scratch_operands = 0 : i64, tpu.core_type = #tpu.core_type<tc>, window_params = [{transform_indices = @transform_0, window_bounds = array<i64: 8, 32>}, {pipeline_mode = #tpu.pipeline_mode<synchronous>, transform_indices = @transform_1, window_bounds = array<i64: 32, 128>}, {pipeline_mode = #tpu.pipeline_mode<synchronous>, transform_indices = @transform_2, window_bounds = array<i64: 1, 128>}, {pipeline_mode = #tpu.pipeline_mode<synchronous>, transform_indices = @transform_3, window_bounds = array<i64: 128, 128>}, {pipeline_mode = #tpu.pipeline_mode<synchronous>, transform_indices = @transform_4, window_bounds = array<i64: 1, 128>}, {transform_indices = @transform_5, window_bounds = array<i64: 8, 8>}]} {
    %c0 = arith.constant 0 : index
    %c0_0 = arith.constant 0 : index
    %0 = vector.load %arg1[%c0, %c0_0] : memref<8x32xf32, #tpu.memory_space<vmem>>, vector<8x32xf32>
    %1 = arith.truncf %0 : vector<8x32xf32> to vector<8x32xbf16>
    %c0_1 = arith.constant 0 : index
    %c0_2 = arith.constant 0 : index
    %2 = vector.load %arg3[%c0_1, %c0_2] : memref<1x128xf32, #tpu.memory_space<vmem>>, vector<1x128xf32>
    %c0_3 = arith.constant 0 : index
    %c0_4 = arith.constant 0 : index
    %3 = vector.load %arg5[%c0_3, %c0_4] : memref<1x128xf32, #tpu.memory_space<vmem>>, vector<1x128xf32>
    %c0_5 = arith.constant 0 : index
    %c0_6 = arith.constant 0 : index
    %4 = vector.load %arg2[%c0_5, %c0_6] : memref<32x128xbf16, #tpu.memory_space<vmem>>, vector<32x128xbf16>
    %cst = arith.constant dense<0.000000e+00> : vector<8x128xf32>
    %5 = tpu.matmul %1, %4, %cst {dimension_numbers = #tpu.dot_dimension_numbers<[1], [0], [0], [1], [0, 0, 1, 1], [], []>} : vector<8x32xbf16>, vector<32x128xbf16>, vector<8x128xf32> -> vector<8x128xf32>
    %6 = vector.broadcast %2 : vector<1x128xf32> to vector<8x128xf32>
    %7 = arith.addf %5, %6 : vector<8x128xf32>
    %cst_7 = arith.constant 0.000000e+00 : f32
    %8 = vector.broadcast %cst_7 : f32 to vector<8x128xf32>
    %9 = arith.maximumf %7, %8 : vector<8x128xf32>
    %10 = arith.truncf %9 : vector<8x128xf32> to vector<8x128xbf16>
    %c0_8 = arith.constant 0 : index
    %c0_9 = arith.constant 0 : index
    %11 = vector.load %arg4[%c0_8, %c0_9] : memref<128x128xbf16, #tpu.memory_space<vmem>>, vector<128x128xbf16>
    %cst_10 = arith.constant dense<0.000000e+00> : vector<8x128xf32>
    %12 = tpu.matmul %10, %11, %cst_10 {dimension_numbers = #tpu.dot_dimension_numbers<[1], [0], [0], [1], [0, 0, 1, 1], [], []>} : vector<8x128xbf16>, vector<128x128xbf16>, vector<8x128xf32> -> vector<8x128xf32>
    %13 = vector.broadcast %3 : vector<1x128xf32> to vector<8x128xf32>
    %14 = arith.addf %12, %13 : vector<8x128xf32>
    %cst_11 = arith.constant dense<0xFF800000> : vector<8xf32>
    %15 = vector.multi_reduction <maximumf>, %14, %cst_11 [1] : vector<8x128xf32> to vector<8xf32>
    %16 = vector.shape_cast %15 : vector<8xf32> to vector<8x1xf32>
    %17 = vector.broadcast %16 : vector<8x1xf32> to vector<8x128xf32>
    %18 = arith.subf %14, %17 : vector<8x128xf32>
    %19 = math.exp %18 : vector<8x128xf32>
    %cst_12 = arith.constant dense<0.000000e+00> : vector<8xf32>
    %20 = vector.multi_reduction <add>, %19, %cst_12 [1] : vector<8x128xf32> to vector<8xf32>
    %21 = vector.shape_cast %20 : vector<8xf32> to vector<8x1xf32>
    %22 = vector.broadcast %21 : vector<8x1xf32> to vector<8x128xf32>
    %23 = arith.divf %19, %22 : vector<8x128xf32>
    %24 = vector.extract_strided_slice %23 {offsets = [0, 0], sizes = [8, 8], strides = [1, 1]} : vector<8x128xf32> to vector<8x8xf32>
    %c0_13 = arith.constant 0 : index
    %c0_14 = arith.constant 0 : index
    %25 = vector.load %arg6[%c0_13, %c0_14] : memref<8x8xf32, #tpu.memory_space<vmem>>, vector<8x8xf32>
    tpu.vector_store %arg6[%c0_13, %c0_14], %24 {strides = array<i32>} : memref<8x8xf32, #tpu.memory_space<vmem>>, vector<8x8xf32>,
    return
  }
  func.func @transform_0(%arg0: i32) -> (i32, i32) {
    %c0_i32 = arith.constant 0 : i32
    %c0_i32_0 = arith.constant 0 : i32
    return %arg0, %c0_i32 : i32, i32
  }
  func.func @transform_1(%arg0: i32) -> (i32, i32) {
    %c0_i32 = arith.constant 0 : i32
    %c0_i32_0 = arith.constant 0 : i32
    %c0_i32_1 = arith.constant 0 : i32
    return %c0_i32, %c0_i32_0 : i32, i32
  }
  func.func @transform_2(%arg0: i32) -> (i32, i32) {
    %c0_i32 = arith.constant 0 : i32
    %c0_i32_0 = arith.constant 0 : i32
    %c0_i32_1 = arith.constant 0 : i32
    return %c0_i32, %c0_i32_0 : i32, i32
  }
  func.func @transform_3(%arg0: i32) -> (i32, i32) {
    %c0_i32 = arith.constant 0 : i32
    %c0_i32_0 = arith.constant 0 : i32
    %c0_i32_1 = arith.constant 0 : i32
    return %c0_i32, %c0_i32_0 : i32, i32
  }
  func.func @transform_4(%arg0: i32) -> (i32, i32) {
    %c0_i32 = arith.constant 0 : i32
    %c0_i32_0 = arith.constant 0 : i32
    %c0_i32_1 = arith.constant 0 : i32
    return %c0_i32, %c0_i32_0 : i32, i32
  }
  func.func @transform_5(%arg0: i32) -> (i32, i32) {
    %c0_i32 = arith.constant 0 : i32
    %c0_i32_0 = arith.constant 0 : i32
    return %arg0, %c0_i32 : i32, i32
  }
}

</mosaic_0001>

<llo_original>
// kernel: tpu_custom_call.1
$region0: #{tpu_custom_call.1}
  #allocation0 [shape = 'u32[]', space=smem, size = 0x4, offset = 0x4, fixed_abs, tag = 'smem constant byte address 0x4 - core index']
  #allocation1 [shape = 'u32[144,128]{1,0:T(1,128)}', space=vmem, size = 0x12000, scoped, tag = 'internal scratch']
  %s0 = inlined_call_operand.hbm [shape: f32[8,32], index: 0, kind: input, shape index: {}]
  %s1 = inlined_call_operand.hbm [shape: bf16[32,128], index: 1, kind: input, shape index: {}]
  %s2 = inlined_call_operand.vmem [shape: f32[1,128], index: 2, kind: input, shape index: {}]
  %s3 = inlined_call_operand.hbm [shape: bf16[128,128], index: 3, kind: input, shape index: {}]
  %s4 = inlined_call_operand.vmem [shape: f32[1,128], index: 4, kind: input, shape index: {}]
  %s5 = inlined_call_operand.hbm [shape: f32[8,8], index: 5, kind: output, shape index: {}]
  %s6 = sld [smem:[#allocation0]]
  $region42: #{tpu_custom_call.1} parent=0
    _
  %s8 = ssub.s32 1, %s6
  %s9 = scalar_select 0, %s8, %s6
  $region1: #{tpu_custom_call.1} parent=0
    #allocation2 [shape = 'u8[4096]{0}', space=vmem, size = 0x1000, scoped, tag = 'input window, operand 0, single buffered']
    #allocation3 [shape = 's32[1]{0}', space=sflag, size = 0x4, scoped, tag = 'scoped memory for tpu_custom_call.1']
    #allocation4 [shape = 's32[1]{0}', space=sflag, size = 0x4, scoped, tag = 'scoped memory for tpu_custom_call.1']
    #allocation5 [shape = 'u8[8192]{0}', space=vmem, size = 0x2000, scoped, tag = 'input window, operand 1, single buffered']
    #allocation6 [shape = 's32[1]{0}', space=sflag, size = 0x4, scoped, tag = 'scoped memory for tpu_custom_call.1']
    #allocation7 [shape = 'u8[32768]{0}', space=vmem, size = 0x8000, scoped, tag = 'input window, operand 3, single buffered']
    #allocation8 [shape = 'u8[4096]{0}', space=vmem, size = 0x1000, scoped, tag = 'output window, operand 0, single buffered']
    %10 = vsyncpa [#allocation3], 0
    %11 = vsyncpa [#allocation6], 0
    %12 = vsyncpa [#allocation4], 0
    // Predicated region
    $region2: #{tpu_custom_call.1} parent=1 // pred_check
      _
    $region3: #{tpu_custom_call.1} parent=1 // pred_check_branch
      %14 = sbr.rel (0) target = $region5
    $region4: #{tpu_custom_call.1} parent=1 // pred_region
      %s16 = ssub.s32 128, 128
      %17 = vsyncadd [#allocation3], %s16
      %s19 = sshll.u32 [#allocation2], 4
      %s20 = int_to_ptr.vmem [resolvable:$true] %s19
      %22 = dma.hbm_to_vmem [thread:$0]  %s0, 128, %s20, [#allocation3]
    $region5: #{tpu_custom_call.1} parent=1 // pred_fallthru
      _
    // Predicated region
    $region6: #{tpu_custom_call.1} parent=1 // pred_check
      _
    $region7: #{tpu_custom_call.1} parent=1 // pred_check_branch
      %24 = sbr.rel (0) target = $region9
    $region8: #{tpu_custom_call.1} parent=1 // pred_region
      %s26 = ssub.s32 256, 256
      %27 = vsyncadd [#allocation6], %s26
      %s28 = sshll.u32 [#allocation5], 4
      %s29 = int_to_ptr.vmem [resolvable:$true] %s28
      %34 = dma.hbm_to_vmem [thread:$0]  %s1, 256, %s29, [#allocation6], 64, 64, 4
    $region9: #{tpu_custom_call.1} parent=1 // pred_fallthru
      _
    // Predicated region
    $region10: #{tpu_custom_call.1} parent=1 // pred_check
      _
    $region11: #{tpu_custom_call.1} parent=1 // pred_check_branch
      %36 = sbr.rel (0) target = $region13
    $region12: #{tpu_custom_call.1} parent=1 // pred_region
      _
    $region13: #{tpu_custom_call.1} parent=1 // pred_fallthru
      _
    // Predicated region
    $region14: #{tpu_custom_call.1} parent=1 // pred_check
      _
    $region15: #{tpu_custom_call.1} parent=1 // pred_check_branch
      %38 = sbr.rel (0) target = $region17
    $region16: #{tpu_custom_call.1} parent=1 // pred_region
      %s40 = ssub.s32 1024, 1024
      %41 = vsyncadd [#allocation6], %s40
      %s42 = sshll.u32 [#allocation7], 4
      %s43 = int_to_ptr.vmem [resolvable:$true] %s42
      %48 = dma.hbm_to_vmem [thread:$0]  %s3, 1024, %s43, [#allocation6], 64, 64, 4
    $region17: #{tpu_custom_call.1} parent=1 // pred_fallthru
      _
    // Predicated region
    $region18: #{tpu_custom_call.1} parent=1 // pred_check
      _
    $region19: #{tpu_custom_call.1} parent=1 // pred_check_branch
      %50 = sbr.rel (0) target = $region21
    $region20: #{tpu_custom_call.1} parent=1 // pred_region
      _
    $region21: #{tpu_custom_call.1} parent=1 // pred_fallthru
      _
    // Predicated region
    $region22: #{tpu_custom_call.1} parent=1 // pred_check
      _
    $region23: #{tpu_custom_call.1} parent=1 // pred_check_branch
      %52 = sbr.rel (0) target = $region25
    $region24: #{tpu_custom_call.1} parent=1 // pred_region
      %53 = dma.done [#allocation3], 128
    $region25: #{tpu_custom_call.1} parent=1 // pred_fallthru
      _
    // Predicated region
    $region26: #{tpu_custom_call.1} parent=1 // pred_check
      _
    $region27: #{tpu_custom_call.1} parent=1 // pred_check_branch
      %55 = sbr.rel (0) target = $region29
    $region28: #{tpu_custom_call.1} parent=1 // pred_region
      %56 = dma.done [#allocation6], 256
    $region29: #{tpu_custom_call.1} parent=1 // pred_fallthru
      _
    // Predicated region
    $region30: #{tpu_custom_call.1} parent=1 // pred_check
      _
    $region31: #{tpu_custom_call.1} parent=1 // pred_check_branch
      %58 = sbr.rel (0) target = $region33
    $region32: #{tpu_custom_call.1} parent=1 // pred_region
      %59 = dma.done [#allocation6], 1024
    $region33: #{tpu_custom_call.1} parent=1 // pred_fallthru
      _
    %v61 = vld [vmem:[#allocation2] sm:$0xff]
    %v62 = vpack.c.bf16 %v61, %v61
    %v63 = vld [vmem:[%s2] sm:$0x1]
    %v64 = vld [vmem:[%s4] sm:$0x1]
    %v65 = vld [vmem:[#allocation5] sm:$0xf]
    %v66 = vld [vmem:[#allocation5 + $0x4] sm:$0xf]
    %v67 = vld [vmem:[#allocation5 + $0x8] sm:$0xf]
    %v68 = vld [vmem:[#allocation5 + $0xc] sm:$0xf]
    %v70 = vlaneseq
    %v71 = vshrl.u32 %v70, 7
    %v72 = vsub.s32 0, %v71
    %v73 = vrot.slane %v63, %v72
    %v79 = vunpack.c.l.b16 %v65
    %v80 = vunpack.c.l.b16 %v66
    %v81 = vunpack.c.l.b16 %v67
    %v82 = vunpack.c.l.b16 %v68
    %v83 = vpack.c.b16 %v80, %v79
    %v84 = vpack.c.b16 %v82, %v81
    %vm87 = vcmask 261120
    %v89 = vsel %vm87, %v62, 0
    %91 = vmatprep.subr.bf16.mxu0 0
    %92 = vmatpush1.bf16.msra.mxu0 %v83
    %93 = vmatprep.subr.bf16.mxu0 0
    %94 = vmatpush1.bf16.msra.mxu0 %v84
    %95 = vmatprep.subr.bf16.mxu0 0
    %96 = vmatpush1.bf16.msra.mxu0 0
    %97 = vmatprep.subr.bf16.mxu0 0
    %98 = vmatpush1.bf16.msra.mxu0 0
    %99 = vmatprep.subr.bf16.mxu0 0
    %100 = vmatpush1.bf16.msra.mxu0 0
    %101 = vmatprep.subr.bf16.mxu0 0
    %102 = vmatpush1.bf16.msra.mxu0 0
    %103 = vmatprep.subr.bf16.mxu0 0
    %104 = vmatpush1.bf16.msra.mxu0 0
    %105 = vmatprep.subr.bf16.mxu0 0
    %106 = vmatpush1.bf16.msra.mxu0 0
    %107 = vmatprep.subr.bf16.mxu0 0
    %108 = vmatpush1.bf16.msra.mxu0 0
    %109 = vmatprep.subr.bf16.mxu0 0
    %110 = vmatpush1.bf16.msra.mxu0 0
    %111 = vmatprep.subr.bf16.mxu0 0
    %112 = vmatpush1.bf16.msra.mxu0 0
    %113 = vmatprep.subr.bf16.mxu0 0
    %114 = vmatpush1.bf16.msra.mxu0 0
    %115 = vmatprep.subr.bf16.mxu0 0
    %116 = vmatpush1.bf16.msra.mxu0 0
    %117 = vmatprep.subr.bf16.mxu0 0
    %118 = vmatpush1.bf16.msra.mxu0 0
    %119 = vmatprep.subr.bf16.mxu0 0
    %120 = vmatpush1.bf16.msra.mxu0 0
    %121 = vmatprep.subr.bf16.mxu0 0
    %122 = vmatpush1.bf16.msra.mxu0 0
    %123 = vmatprep.mubr.bf16.mxu0 0
    %124 = vmatmul.mubr.bf16.gmra.mrb[0].mxu0 %v89
    %v125 = vpop.f32.mrb[0].mxu0
    %v126 = vadd.f32 %v73, %v125
    %v127 = vpop.f32.mrb[0].mxu0
    %v128 = vpop.f32.mrb[0].mxu0
    %v129 = vpop.f32.mrb[0].mxu0
    %130 = vdwg.mxu0
    %v131 = vmax.f32 %v126, 0.0
    %v132 = vpack.c.bf16 %v131, %v131
    %v133 = vld [vmem:[#allocation7] sm:$0xf]
    %v134 = vld [vmem:[#allocation7 + $0x4] sm:$0xf]
    %v135 = vld [vmem:[#allocation7 + $0x8] sm:$0xf]
    %v136 = vld [vmem:[#allocation7 + $0xc] sm:$0xf]
    %v137 = vld [vmem:[#allocation7 + $0x10] sm:$0xf]
    %v138 = vld [vmem:[#allocation7 + $0x14] sm:$0xf]
    %v139 = vld [vmem:[#allocation7 + $0x18] sm:$0xf]
    %v140 = vld [vmem:[#allocation7 + $0x1c] sm:$0xf]
    %v141 = vld [vmem:[#allocation7 + $0x20] sm:$0xf]
    %v142 = vld [vmem:[#allocation7 + $0x24] sm:$0xf]
    %v143 = vld [vmem:[#allocation7 + $0x28] sm:$0xf]
    %v144 = vld [vmem:[#allocation7 + $0x2c] sm:$0xf]
    %v145 = vld [vmem:[#allocation7 + $0x30] sm:$0xf]
    %v146 = vld [vmem:[#allocation7 + $0x34] sm:$0xf]
    %v147 = vld [vmem:[#allocation7 + $0x38] sm:$0xf]
    %v148 = vld [vmem:[#allocation7 + $0x3c] sm:$0xf]
    %v150 = vlaneseq
    %v151 = vshrl.u32 %v150, 7
    %v152 = vsub.s32 0, %v151
    %v153 = vrot.slane %v64, %v152
    %v171 = vunpack.c.l.b16 %v133
    %v172 = vunpack.c.l.b16 %v134
    %v173 = vunpack.c.l.b16 %v135
    %v174 = vunpack.c.l.b16 %v136
    %v175 = vunpack.c.l.b16 %v137
    %v176 = vunpack.c.l.b16 %v138
    %v177 = vunpack.c.l.b16 %v139
    %v178 = vunpack.c.l.b16 %v140
    %v179 = vunpack.c.l.b16 %v141
    %v180 = vunpack.c.l.b16 %v142
    %v181 = vunpack.c.l.b16 %v143
    %v182 = vunpack.c.l.b16 %v144
    %v183 = vunpack.c.l.b16 %v145
    %v184 = vunpack.c.l.b16 %v146
    %v185 = vunpack.c.l.b16 %v147
    %v186 = vunpack.c.l.b16 %v148
    %v187 = vpack.c.b16 %v172, %v171
    %v188 = vpack.c.b16 %v174, %v173
    %v189 = vpack.c.b16 %v176, %v175
    %v190 = vpack.c.b16 %v178, %v177
    %v191 = vpack.c.b16 %v180, %v179
    %v192 = vpack.c.b16 %v182, %v181
    %v193 = vpack.c.b16 %v184, %v183
    %v194 = vpack.c.b16 %v186, %v185
    %203 = vmatprep.subr.bf16.mxu0 0
    %204 = vmatpush1.bf16.msra.mxu0 %v187
    %205 = vmatprep.subr.bf16.mxu0 0
    %206 = vmatpush1.bf16.msra.mxu0 %v188
    %207 = vmatprep.subr.bf16.mxu0 0
    %208 = vmatpush1.bf16.msra.mxu0 %v189
    %209 = vmatprep.subr.bf16.mxu0 0
    %210 = vmatpush1.bf16.msra.mxu0 %v190
    %211 = vmatprep.subr.bf16.mxu0 0
    %212 = vmatpush1.bf16.msra.mxu0 %v191
    %213 = vmatprep.subr.bf16.mxu0 0
    %214 = vmatpush1.bf16.msra.mxu0 %v192
    %215 = vmatprep.subr.bf16.mxu0 0
    %216 = vmatpush1.bf16.msra.mxu0 %v193
    %217 = vmatprep.subr.bf16.mxu0 0
    %218 = vmatpush1.bf16.msra.mxu0 %v194
    %219 = vmatprep.subr.bf16.mxu0 0
    %220 = vmatpush1.bf16.msra.mxu0 0
    %221 = vmatprep.subr.bf16.mxu0 0
    %222 = vmatpush1.bf16.msra.mxu0 0
    %223 = vmatprep.subr.bf16.mxu0 0
    %224 = vmatpush1.bf16.msra.mxu0 0
    %225 = vmatprep.subr.bf16.mxu0 0
    %226 = vmatpush1.bf16.msra.mxu0 0
    %227 = vmatprep.subr.bf16.mxu0 0
    %228 = vmatpush1.bf16.msra.mxu0 0
    %229 = vmatprep.subr.bf16.mxu0 0
    %230 = vmatpush1.bf16.msra.mxu0 0
    %231 = vmatprep.subr.bf16.mxu0 0
    %232 = vmatpush1.bf16.msra.mxu0 0
    %233 = vmatprep.subr.bf16.mxu0 0
    %234 = vmatpush1.bf16.msra.mxu0 0
    %235 = vmatprep.mubr.bf16.mxu0 0
    %236 = vmatmul.mubr.bf16.gmra.mrb[0].mxu0 %v132
    %v237 = vpop.f32.mrb[0].mxu0
    %v238 = vadd.f32 %v153, %v237
    %v239 = vpop.f32.mrb[0].mxu0
    %v240 = vpop.f32.mrb[0].mxu0
    %v241 = vpop.f32.mrb[0].mxu0
    %242 = vdwg.mxu0
    %243 = vmax.xlane.f32.xlu0 %v238
    %v244 = vpop.xlane.xlu0 %243
    %v245 = vsub.f32 %v238, %v244
    %v246 = vmul.f32 %v245, 1.442695
    %v247 = vpow.pop %v246
    %248 = vadd.xlane.f32.xlu0 %v247
    %v249 = vpop.xlane.xlu0 %248
    %v250 = vrcp.pop %v249
    %v251 = vmul.f32 %v247, %v250
    %vm252 = vcmask 64512
    %253 = vst.msk [vmem:[#allocation8] sm:$0xff] %vm252, %v251
    // Predicated region
    $region34: #{tpu_custom_call.1} parent=1 // pred_check
      _
    $region35: #{tpu_custom_call.1} parent=1 // pred_check_branch
      %255 = sbr.rel (0) target = $region37
    $region36: #{tpu_custom_call.1} parent=1 // pred_region
      %s257 = ssub.s32 128, 128
      %258 = vsyncadd [#allocation4], %s257
      %s260 = sshll.u32 [#allocation8], 4
      %s261 = int_to_ptr.vmem [resolvable:$true] %s260
      %263 = dma.vmem_to_hbm [thread:$0]  %s261, 128, %s5, [#allocation4]
    $region37: #{tpu_custom_call.1} parent=1 // pred_fallthru
      _
    // Predicated region
    $region38: #{tpu_custom_call.1} parent=1 // pred_check
      _
    $region39: #{tpu_custom_call.1} parent=1 // pred_check_branch
      %265 = sbr.rel (0) target = $region41
    $region40: #{tpu_custom_call.1} parent=1 // pred_region
      %266 = dma.done [#allocation4], 128
    $region41: #{tpu_custom_call.1} parent=1 // pred_fallthru
      _
    %267 = vsyncpa [#allocation3], 1
    %268 = vsyncpa [#allocation6], 1
    %269 = vsyncpa [#allocation4], 1

</llo_original>
